<compile_context>
chip_gen: v5e
topology: v5e:2x2
jax: 0.10.0
libtpu: 0.0.40
codegen_flags: <defaults>
</compile_context>

<pallas_src>
import functools
import math

import jax
import jax.numpy as jnp
from jax.experimental import pallas as pl
from jax.experimental.pallas import tpu as pltpu


def _round_up(x, m):
    return ((x + m - 1) // m) * m


# ----------------------------------------------------------------------------
# Pallas kernel: fused 3-layer MLP, shared-feature matmul + block-diag per-agent
# matmuls (4 MXU issues total per row tile).
# ----------------------------------------------------------------------------
def _pac_mlp_kernel(xs_ref, oa_ref,
                    w1s_ref, b1_ref, w1a_ref,
                    w2_ref, b2_ref, w3_ref, b3_ref,
                    o_ref, *, n_agents):
    # fc1 contribution of the agent-shared features: ONE matmul per row tile.
    h_sh = (jnp.dot(xs_ref[...], w1s_ref[...],
                    preferred_element_type=jnp.float32) + b1_ref[...])
    # Tile across agents along lanes -> (tr, n_agents*h).  Single lane concat.
    h_sh_t = jnp.concatenate([h_sh] * n_agents, axis=-1)

    # fc1 other-agents-actions contribution: block-diagonal weight, all agents
    # in one matmul; then ReLU in f32.
    h1 = jnp.maximum(
        h_sh_t + jnp.dot(oa_ref[...], w1a_ref[...],
                         preferred_element_type=jnp.float32), 0.0)

    # fc2 / fc3: block-diagonal, all agents at once; result is already in the
    # final (tr, n_agents*n_actions) layout.
    h2 = jnp.maximum(
        jnp.dot(h1.astype(jnp.bfloat16), w2_ref[...],
                preferred_element_type=jnp.float32) + b2_ref[...], 0.0)
    q = (jnp.dot(h2.astype(jnp.bfloat16), w3_ref[...],
                 preferred_element_type=jnp.float32) + b3_ref[...])

    # Unpadded store: last dim equals the full output width (no padding bytes).
    o_ref[...] = q.astype(o_ref.dtype)


# ----------------------------------------------------------------------------
# Wrapper: tiles rows = bs*T over a 1-D parallel grid.
# ----------------------------------------------------------------------------
def pac_critic_mlp(x_shared, other2d, params, *, n_agents, n_actions, tr=1024):
    w1, b1, w2, b2, w3, b3 = params
    r, d_sh = x_shared.shape
    h = w1.shape[1]
    d_other = n_actions * (n_agents - 1)
    d_oth_tot = n_agents * d_other
    nh = n_agents * h
    na = n_agents * n_actions
    assert other2d.shape == (r, d_oth_tot)
    assert w1.shape[0] == d_sh + d_other

    # Split fc1 weights: shared-feature rows vs other-agents-actions rows
    # (concat order of the original module).
    w1s = w1[:d_sh]
    w1a = w1[d_sh:]

    # Block-diagonal weights (same per-agent weight repeated on the diagonal),
    # built once per call outside the kernel.
    eye = jnp.eye(n_agents, dtype=w1.dtype)
    w1a_bd = jnp.kron(eye, w1a)   # (n_agents*d_other, n_agents*h)
    w2_bd = jnp.kron(eye, w2)     # (n_agents*h,       n_agents*h)
    w3_bd = jnp.kron(eye, w3)     # (n_agents*h,       n_agents*n_actions)

    # bf16 streaming for matmul operands; biases stay f32 (f32 elementwise).
    bf = jnp.bfloat16
    xs_b = x_shared.astype(bf)
    oa_b = other2d.astype(bf)
    w1s_b, w1a_b, w2_b, w3_b = (t.astype(bf) for t in (w1s, w1a_bd, w2_bd, w3_bd))
    b1r = b1.reshape(1, h).astype(jnp.float32)
    b2r = jnp.tile(b2.reshape(1, h), (1, n_agents)).astype(jnp.float32)
    b3r = jnp.tile(b3.reshape(1, n_actions), (1, n_agents)).astype(jnp.float32)

    # Row tile: big (amortize per-step cost), but guarantee >= 2 grid steps so
    # the parallel axis shards across both TensorCores on v7x; multiple of 8.
    # At these feature widths even tr=1024 is well under the scoped VMEM limit
    # on every generation, so no vmem_limit_bytes override is needed.
    tr = min(tr, _round_up(pl.cdiv(r, 2), 8))
    grid = (pl.cdiv(r, tr),)

    full = lambda i: (0, 0)
    kernel = functools.partial(_pac_mlp_kernel, n_agents=n_agents)

    flops = 2 * r * (d_sh * h + d_oth_tot * nh + nh * nh + nh * na)
    bytes_accessed = (2 * r * (d_sh + d_oth_tot)                       # inputs (bf16)
                      + 4 * r * na                                     # output (f32, unpadded)
                      + 2 * (w1s_b.size + w1a_b.size + w2_b.size + w3_b.size)
                      + 4 * (h + nh + na))                             # biases

    out = pl.pallas_call(
        kernel,
        out_shape=jax.ShapeDtypeStruct((r, na), jnp.float32),
        grid_spec=pltpu.PrefetchScalarGridSpec(
            num_scalar_prefetch=0,
            grid=grid,
            in_specs=[
                pl.BlockSpec((tr, d_sh), lambda i: (i, 0)),       # shared features
                pl.BlockSpec((tr, d_oth_tot), lambda i: (i, 0)),  # other agents' actions
                pl.BlockSpec((d_sh, h), full),                    # W1_shared
                pl.BlockSpec((1, h), full),                       # b1
                pl.BlockSpec((d_oth_tot, nh), full),              # W1_other block-diag
                pl.BlockSpec((nh, nh), full),                     # W2 block-diag
                pl.BlockSpec((1, nh), full),                      # b2 tiled
                pl.BlockSpec((nh, na), full),                     # W3 block-diag
                pl.BlockSpec((1, na), full),                      # b3 tiled
            ],
            out_specs=pl.BlockSpec((tr, na), lambda i: (i, 0)),
        ),
        compiler_params=pltpu.CompilerParams(
            dimension_semantics=("parallel",)),
        cost_estimate=pl.CostEstimate(flops=flops, transcendentals=0,
                                      bytes_accessed=bytes_accessed),
    )(xs_b, oa_b, w1s_b, b1r, w1a_b, w2_b, b2r, w3_b, b3r)

    return out   # (r, n_agents*n_actions) — final layout, no slice needed


# ----------------------------------------------------------------------------
# Input construction (glue) — mirrors PACCritic._build_inputs_cur (t=None),
# WITHOUT materializing the per-agent replicated concat.
# Assumes obs_individual_obs=True and obs_last_action=True.
# ----------------------------------------------------------------------------
def build_critic_inputs(state, obs, actions_onehot):
    bs, T, n_agents, n_actions = actions_onehot.shape
    r = bs * T
    state2d = state.reshape(r, -1)
    obs2d = obs.reshape(r, -1)                                   # joint obs
    last = jnp.concatenate(
        [jnp.zeros_like(actions_onehot[:, 0:1]), actions_onehot[:, :-1]], axis=1)
    last2d = last.reshape(r, -1)                                 # joint last actions
    x_shared = jnp.concatenate([state2d, obs2d, last2d], axis=-1)
    # other agents' actions: for agent i, concat one-hots of all j != i
    per_agent = []
    for i in range(n_agents):
        per_agent.append(jnp.concatenate(
            [actions_onehot[:, :, j] for j in range(n_agents) if j != i], axis=-1))
    other_actions = jnp.stack(per_agent, axis=2)   # (bs, T, n_agents, (n_agents-1)*A)
    other2d = other_actions.reshape(r, n_agents * (n_agents - 1) * n_actions)
    return x_shared, other2d, other_actions


# ----------------------------------------------------------------------------
# Deterministic parameter init (PyTorch nn.Linear-style uniform bounds)
# ----------------------------------------------------------------------------
def init_linear(key, fan_in, fan_out):
    kw, kb = jax.random.split(key)
    bound = 1.0 / math.sqrt(fan_in)
    w = jax.random.uniform(kw, (fan_in, fan_out), jnp.float32, -bound, bound)
    b = jax.random.uniform(kb, (fan_out,), jnp.float32, -bound, bound)
    return w, b


def pac_critic_forward(state, obs, actions_onehot, params):
    bs, T, n_agents, n_actions = actions_onehot.shape
    x_shared, other2d, other_actions = build_critic_inputs(state, obs, actions_onehot)
    q2d = pac_critic_mlp(x_shared, other2d, params,
                         n_agents=n_agents, n_actions=n_actions)
    q = q2d.reshape(bs, T, n_agents, n_actions)
    return q, other_actions


if __name__ == "__main__":
    # Small synthetic config (mirrors scheme/args of PACCritic)
    bs, T = 2, 8
    n_agents, n_actions = 3, 5
    state_dim, obs_dim = 12, 6
    hidden_dim = 32
    input_shape = (state_dim + obs_dim * n_agents + n_actions * n_agents
                   + n_actions * (n_agents - 1))

    key = jax.random.PRNGKey(0)
    k_state, k_obs, k_act, k1, k2, k3 = jax.random.split(key, 6)

    state = jax.random.normal(k_state, (bs, T, state_dim), jnp.float32)
    obs = jax.random.normal(k_obs, (bs, T, n_agents, obs_dim), jnp.float32)
    act_idx = jax.random.randint(k_act, (bs, T, n_agents), 0, n_actions)
    actions_onehot = jax.nn.one_hot(act_idx, n_actions, dtype=jnp.float32)

    w1, b1 = init_linear(k1, input_shape, hidden_dim)
    w2, b2 = init_linear(k2, hidden_dim, hidden_dim)
    w3, b3 = init_linear(k3, n_actions, n_actions) if False else init_linear(k3, hidden_dim, n_actions)
    params = (w1, b1, w2, b2, w3, b3)

    q, other_actions = pac_critic_forward(state, obs, actions_onehot, params)
    q = jax.block_until_ready(q)

    # Reference (plain JAX, same semantics as the PyTorch module) with the same
    # bf16 operand casts as the kernel, so only accumulation order differs.
    rep = lambda x: jnp.broadcast_to(x[:, :, None, :],
                                     (bs, T, n_agents, x.shape[-1]))
    last = jnp.concatenate([jnp.zeros_like(actions_onehot[:, 0:1]),
                            actions_onehot[:, :-1]], axis=1).reshape(bs, T, -1)
    inputs_full = jnp.concatenate(
        [rep(state), rep(obs.reshape(bs, T, -1)), rep(last), other_actions], axis=-1)
    xb = inputs_full.astype(jnp.bfloat16)
    w1b, w2b, w3b = (w.astype(jnp.bfloat16) for w in (w1, w2, w3))
    h_ref = jax.nn.relu(jnp.dot(xb, w1b, preferred_element_type=jnp.float32) + b1)
    h_ref = jax.nn.relu(jnp.dot(h_ref.astype(jnp.bfloat16), w2b,
                                preferred_element_type=jnp.float32) + b2)
    q_ref = jnp.dot(h_ref.astype(jnp.bfloat16), w3b,
                    preferred_element_type=jnp.float32) + b3

    assert q.shape == (bs, T, n_agents, n_actions)
    assert other_actions.shape == (bs, T, n_agents, (n_agents - 1) * n_actions)
    assert jnp.allclose(q, q_ref, atol=2e-3, rtol=2e-3)

    print("KERNEL_OK")
</pallas_src>

<mosaic_0001>
module attributes {stable_mosaic.version = 11 : i64} {
  func.func @_pac_mlp_kernel(%arg0: i32, %arg1: memref<8x45xbf16, #tpu.memory_space<vmem>>, %arg2: memref<8x30xbf16, #tpu.memory_space<vmem>>, %arg3: memref<45x32xbf16, #tpu.memory_space<vmem>>, %arg4: memref<1x32xf32, #tpu.memory_space<vmem>>, %arg5: memref<30x96xbf16, #tpu.memory_space<vmem>>, %arg6: memref<96x96xbf16, #tpu.memory_space<vmem>>, %arg7: memref<1x96xf32, #tpu.memory_space<vmem>>, %arg8: memref<96x15xbf16, #tpu.memory_space<vmem>>, %arg9: memref<1x15xf32, #tpu.memory_space<vmem>>, %arg10: memref<8x15xf32, #tpu.memory_space<vmem>>) attributes {dimension_semantics = [#tpu.dimension_semantics<parallel>], iteration_bounds = array<i64: 2>, scalar_prefetch = 0 : i64, scratch_operands = 0 : i64, tpu.core_type = #tpu.core_type<tc>, window_params = [{transform_indices = @transform_0, window_bounds = array<i64: 8, 45>}, {transform_indices = @transform_1, window_bounds = array<i64: 8, 30>}, {pipeline_mode = #tpu.pipeline_mode<synchronous>, transform_indices = @transform_2, window_bounds = array<i64: 45, 32>}, {pipeline_mode = #tpu.pipeline_mode<synchronous>, transform_indices = @transform_3, window_bounds = array<i64: 1, 32>}, {pipeline_mode = #tpu.pipeline_mode<synchronous>, transform_indices = @transform_4, window_bounds = array<i64: 30, 96>}, {pipeline_mode = #tpu.pipeline_mode<synchronous>, transform_indices = @transform_5, window_bounds = array<i64: 96, 96>}, {pipeline_mode = #tpu.pipeline_mode<synchronous>, transform_indices = @transform_6, window_bounds = array<i64: 1, 96>}, {pipeline_mode = #tpu.pipeline_mode<synchronous>, transform_indices = @transform_7, window_bounds = array<i64: 96, 15>}, {pipeline_mode = #tpu.pipeline_mode<synchronous>, transform_indices = @transform_8, window_bounds = array<i64: 1, 15>}, {transform_indices = @transform_9, window_bounds = array<i64: 8, 15>}]} {
    %c0 = arith.constant 0 : index
    %c0_0 = arith.constant 0 : index
    %0 = vector.load %arg1[%c0, %c0_0] : memref<8x45xbf16, #tpu.memory_space<vmem>>, vector<8x45xbf16>
    %c0_1 = arith.constant 0 : index
    %c0_2 = arith.constant 0 : index
    %1 = vector.load %arg3[%c0_1, %c0_2] : memref<45x32xbf16, #tpu.memory_space<vmem>>, vector<45x32xbf16>
    %cst = arith.constant dense<0.000000e+00> : vector<8x32xf32>
    %2 = tpu.matmul %0, %1, %cst {dimension_numbers = #tpu.dot_dimension_numbers<[1], [0], [0], [1], [0, 0, 1, 1], [], []>} : vector<8x45xbf16>, vector<45x32xbf16>, vector<8x32xf32> -> vector<8x32xf32>
    %c0_3 = arith.constant 0 : index
    %c0_4 = arith.constant 0 : index
    %3 = vector.load %arg4[%c0_3, %c0_4] : memref<1x32xf32, #tpu.memory_space<vmem>>, vector<1x32xf32>
    %4 = vector.broadcast %3 : vector<1x32xf32> to vector<8x32xf32>
    %5 = arith.addf %2, %4 : vector<8x32xf32>
    %6 = tpu.concatenate %5, %5, %5 in 1 : vector<8x32xf32>, vector<8x32xf32>, vector<8x32xf32> -> vector<8x96xf32>
    %c0_5 = arith.constant 0 : index
    %c0_6 = arith.constant 0 : index
    %7 = vector.load %arg2[%c0_5, %c0_6] : memref<8x30xbf16, #tpu.memory_space<vmem>>, vector<8x30xbf16>
    %c0_7 = arith.constant 0 : index
    %c0_8 = arith.constant 0 : index
    %8 = vector.load %arg5[%c0_7, %c0_8] : memref<30x96xbf16, #tpu.memory_space<vmem>>, vector<30x96xbf16>
    %cst_9 = arith.constant dense<0.000000e+00> : vector<8x96xf32>
    %9 = tpu.matmul %7, %8, %cst_9 {dimension_numbers = #tpu.dot_dimension_numbers<[1], [0], [0], [1], [0, 0, 1, 1], [], []>} : vector<8x30xbf16>, vector<30x96xbf16>, vector<8x96xf32> -> vector<8x96xf32>
    %10 = arith.addf %6, %9 : vector<8x96xf32>
    %cst_10 = arith.constant 0.000000e+00 : f32
    %11 = vector.broadcast %cst_10 : f32 to vector<8x96xf32>
    %12 = arith.maximumf %10, %11 : vector<8x96xf32>
    %13 = arith.truncf %12 : vector<8x96xf32> to vector<8x96xbf16>
    %c0_11 = arith.constant 0 : index
    %c0_12 = arith.constant 0 : index
    %14 = vector.load %arg6[%c0_11, %c0_12] : memref<96x96xbf16, #tpu.memory_space<vmem>>, vector<96x96xbf16>
    %cst_13 = arith.constant dense<0.000000e+00> : vector<8x96xf32>
    %15 = tpu.matmul %13, %14, %cst_13 {dimension_numbers = #tpu.dot_dimension_numbers<[1], [0], [0], [1], [0, 0, 1, 1], [], []>} : vector<8x96xbf16>, vector<96x96xbf16>, vector<8x96xf32> -> vector<8x96xf32>
    %c0_14 = arith.constant 0 : index
    %c0_15 = arith.constant 0 : index
    %16 = vector.load %arg7[%c0_14, %c0_15] : memref<1x96xf32, #tpu.memory_space<vmem>>, vector<1x96xf32>
    %17 = vector.broadcast %16 : vector<1x96xf32> to vector<8x96xf32>
    %18 = arith.addf %15, %17 : vector<8x96xf32>
    %cst_16 = arith.constant 0.000000e+00 : f32
    %19 = vector.broadcast %cst_16 : f32 to vector<8x96xf32>
    %20 = arith.maximumf %18, %19 : vector<8x96xf32>
    %21 = arith.truncf %20 : vector<8x96xf32> to vector<8x96xbf16>
    %c0_17 = arith.constant 0 : index
    %c0_18 = arith.constant 0 : index
    %22 = vector.load %arg8[%c0_17, %c0_18] : memref<96x15xbf16, #tpu.memory_space<vmem>>, vector<96x15xbf16>
    %cst_19 = arith.constant dense<0.000000e+00> : vector<8x15xf32>
    %23 = tpu.matmul %21, %22, %cst_19 {dimension_numbers = #tpu.dot_dimension_numbers<[1], [0], [0], [1], [0, 0, 1, 1], [], []>} : vector<8x96xbf16>, vector<96x15xbf16>, vector<8x15xf32> -> vector<8x15xf32>
    %c0_20 = arith.constant 0 : index
    %c0_21 = arith.constant 0 : index
    %24 = vector.load %arg9[%c0_20, %c0_21] : memref<1x15xf32, #tpu.memory_space<vmem>>, vector<1x15xf32>
    %25 = vector.broadcast %24 : vector<1x15xf32> to vector<8x15xf32>
    %26 = arith.addf %23, %25 : vector<8x15xf32>
    %c0_22 = arith.constant 0 : index
    %c0_23 = arith.constant 0 : index
    %27 = vector.load %arg10[%c0_22, %c0_23] : memref<8x15xf32, #tpu.memory_space<vmem>>, vector<8x15xf32>
    tpu.vector_store %arg10[%c0_22, %c0_23], %26 {strides = array<i32>} : memref<8x15xf32, #tpu.memory_space<vmem>>, vector<8x15xf32>,
    return
  }
  func.func @transform_0(%arg0: i32) -> (i32, i32) {
    %c0_i32 = arith.constant 0 : i32
    %c0_i32_0 = arith.constant 0 : i32
    return %arg0, %c0_i32 : i32, i32
  }
  func.func @transform_1(%arg0: i32) -> (i32, i32) {
    %c0_i32 = arith.constant 0 : i32
    %c0_i32_0 = arith.constant 0 : i32
    return %arg0, %c0_i32 : i32, i32
  }
  func.func @transform_2(%arg0: i32) -> (i32, i32) {
    %c0_i32 = arith.constant 0 : i32
    %c0_i32_0 = arith.constant 0 : i32
    %c0_i32_1 = arith.constant 0 : i32
    return %c0_i32, %c0_i32_0 : i32, i32
  }
  func.func @transform_3(%arg0: i32) -> (i32, i32) {
    %c0_i32 = arith.constant 0 : i32
    %c0_i32_0 = arith.constant 0 : i32
    %c0_i32_1 = arith.constant 0 : i32
    return %c0_i32, %c0_i32_0 : i32, i32
  }
  func.func @transform_4(%arg0: i32) -> (i32, i32) {
    %c0_i32 = arith.constant 0 : i32
    %c0_i32_0 = arith.constant 0 : i32
    %c0_i32_1 = arith.constant 0 : i32
    return %c0_i32, %c0_i32_0 : i32, i32
  }
  func.func @transform_5(%arg0: i32) -> (i32, i32) {
    %c0_i32 = arith.constant 0 : i32
    %c0_i32_0 = arith.constant 0 : i32
    %c0_i32_1 = arith.constant 0 : i32
    return %c0_i32, %c0_i32_0 : i32, i32
  }
  func.func @transform_6(%arg0: i32) -> (i32, i32) {
    %c0_i32 = arith.constant 0 : i32
    %c0_i32_0 = arith.constant 0 : i32
    %c0_i32_1 = arith.constant 0 : i32
    return %c0_i32, %c0_i32_0 : i32, i32
  }
  func.func @transform_7(%arg0: i32) -> (i32, i32) {
    %c0_i32 = arith.constant 0 : i32
    %c0_i32_0 = arith.constant 0 : i32
    %c0_i32_1 = arith.constant 0 : i32
    return %c0_i32, %c0_i32_0 : i32, i32
  }
  func.func @transform_8(%arg0: i32) -> (i32, i32) {
    %c0_i32 = arith.constant 0 : i32
    %c0_i32_0 = arith.constant 0 : i32
    %c0_i32_1 = arith.constant 0 : i32
    return %c0_i32, %c0_i32_0 : i32, i32
  }
  func.func @transform_9(%arg0: i32) -> (i32, i32) {
    %c0_i32 = arith.constant 0 : i32
    %c0_i32_0 = arith.constant 0 : i32
    return %arg0, %c0_i32 : i32, i32
  }
}

</mosaic_0001>

<llo_original>
// kernel: tpu_custom_call.1
$region0: #{tpu_custom_call.1}
  #allocation0 [shape = 'u32[]', space=smem, size = 0x4, offset = 0x4, fixed_abs, tag = 'smem constant byte address 0x4 - core index']
  #allocation1 [shape = 'u32[72,128]{1,0:T(1,128)}', space=vmem, size = 0x9000, scoped, tag = 'internal scratch']
  %s0 = inlined_call_operand.vmem [shape: bf16[16,45], index: 0, kind: input, shape index: {}]
  %s1 = inlined_call_operand.vmem [shape: bf16[16,30], index: 1, kind: input, shape index: {}]
  %s2 = inlined_call_operand.vmem [shape: bf16[45,32], index: 2, kind: input, shape index: {}]
  %s3 = inlined_call_operand.vmem [shape: f32[1,32], index: 3, kind: input, shape index: {}]
  %s4 = inlined_call_operand.vmem [shape: bf16[30,96], index: 4, kind: input, shape index: {}]
  %s5 = inlined_call_operand.vmem [shape: bf16[96,96], index: 5, kind: input, shape index: {}]
  %s6 = inlined_call_operand.vmem [shape: f32[1,96], index: 6, kind: input, shape index: {}]
  %s7 = inlined_call_operand.vmem [shape: bf16[96,15], index: 7, kind: input, shape index: {}]
  %s8 = inlined_call_operand.vmem [shape: f32[1,15], index: 8, kind: input, shape index: {}]
  %s9 = inlined_call_operand.hbm [shape: f32[16,15], index: 9, kind: output, shape index: {}]
  %s10 = sld [smem:[#allocation0]]
  $region69: #{tpu_custom_call.1} parent=0
    _
  %s12 = ssub.s32 1, %s10
  %s13 = scalar_select 0, %s12, %s10
  $region1: #{tpu_custom_call.1} parent=0
    #allocation2 [shape = 'u8[8192]{0}', space=vmem, size = 0x2000, scoped, tag = 'output window, operand 0']
    #allocation3 [shape = 's32[2]{0}', space=sflag, size = 0x8, scoped, tag = 'scoped memory for tpu_custom_call.1']
    %14 = vsyncpa [#allocation3], 0
    %s15 = scalar_lea.sflag [#allocation3], 1
    %16 = vsyncpa %s15, 0
    loop: start=0, step=1, limit=4
    $region2: #{tpu_custom_call.1} parent=1 // loop_pre_header
      _
    $region3: #{tpu_custom_call.1} parent=1 // loop_header
      %s18 = sphi 0, %s22
      %p19 = scmp.ge.s32.totalorder %s18, 4
      %s28 = sphi 0, %s30
      %s31 = sphi 0, %s28
      %s32 = sphi 0, %s31
      %s48 = sphi 0, %s32
      %s54 = sphi 0, %s56
      %s57 = sphi 0, %s54
      %s58 = sphi 0, %s57
      %s74 = sphi 0, %s58
      %s78 = sphi 0, %s78
      %s80 = sphi 0, %s78
      %s81 = sphi 0, %s80
      %s95 = sphi 0, %s81
      %s99 = sphi 0, %s99
      %s101 = sphi 0, %s99
      %s102 = sphi 0, %s101
      %s116 = sphi 0, %s102
      %s120 = sphi 0, %s120
      %s122 = sphi 0, %s120
      %s123 = sphi 0, %s122
      %s137 = sphi 0, %s123
      %s141 = sphi 0, %s141
      %s143 = sphi 0, %s141
      %s144 = sphi 0, %s143
      %s158 = sphi 0, %s144
      %s162 = sphi 0, %s162
      %s164 = sphi 0, %s162
      %s165 = sphi 0, %s164
      %s179 = sphi 0, %s165
      %s183 = sphi 0, %s183
      %s185 = sphi 0, %s183
      %s186 = sphi 0, %s185
      %s200 = sphi 0, %s186
      %s204 = sphi 0, %s204
      %s206 = sphi 0, %s204
      %s207 = sphi 0, %s206
      %s221 = sphi 0, %s207
      %s227 = sphi 0, %s229
      %s230 = sphi 0, %s227
      %s231 = sphi 0, %s230
      %s247 = sphi 0, %s231
    $region4: #{tpu_custom_call.1} parent=1 // loop_header_branch
      %21 = sbr.rel (%p19) target = $region8
    $region5: #{tpu_custom_call.1} parent=1 // loop_body
      %s23 = ssub.s32 %s18, 1
      %s24 = ssub.s32 %s18, 2
      %s25 = sadd.s32 %s18, 1
      %s26 = ssub.s32 %s18, %s25
      %p27 = scmp.eq.s32.totalorder %s26, 0
      %s29 = sadd.s32 %s28, 1
      %s30 = scalar_select %p27, %s28, %s29
      %p33 = pneg %p27
      %p34 = scmp.eq.s32.totalorder %s18, 1
      %p35 = por %p33, %p34
      %p36 = scmp.ne.s32.totalorder %s28, %s31
      %p37 = scmp.eq.s32.totalorder %s18, 0
      %p38 = por %p36, %p37
      %p39 = scmp.ne.s32.totalorder %s28, %s31
      %p40 = scmp.eq.s32.totalorder %s23, 1
      %p41 = por %p39, %p40
      %p42 = scmp.ne.s32.totalorder %s31, %s32
      %p43 = scmp.eq.s32.totalorder %s23, 0
      %p44 = por %p42, %p43
      %p45 = scmp.ne.s32.totalorder %s31, %s32
      %p46 = scmp.eq.s32.totalorder %s24, 1
      %p47 = por %p45, %p46
      %p49 = scmp.ne.s32.totalorder %s32, %s48
      %p50 = scmp.eq.s32.totalorder %s24, 0
      %p51 = por %p49, %p50
      %s52 = ssub.s32 %s18, %s25
      %p53 = scmp.eq.s32.totalorder %s52, 0
      %s55 = sadd.s32 %s54, 1
      %s56 = scalar_select %p53, %s54, %s55
      %p59 = pneg %p53
      %p60 = scmp.eq.s32.totalorder %s18, 1
      %p61 = por %p59, %p60
      %p62 = scmp.ne.s32.totalorder %s54, %s57
      %p63 = scmp.eq.s32.totalorder %s18, 0
      %p64 = por %p62, %p63
      %p65 = scmp.ne.s32.totalorder %s54, %s57
      %p66 = scmp.eq.s32.totalorder %s23, 1
      %p67 = por %p65, %p66
      %p68 = scmp.ne.s32.totalorder %s57, %s58
      %p69 = scmp.eq.s32.totalorder %s23, 0
      %p70 = por %p68, %p69
      %p71 = scmp.ne.s32.totalorder %s57, %s58
      %p72 = scmp.eq.s32.totalorder %s24, 1
      %p73 = por %p71, %p72
      %p75 = scmp.ne.s32.totalorder %s58, %s74
      %p76 = scmp.eq.s32.totalorder %s24, 0
      %p77 = por %p75, %p76
      %s79 = sadd.s32 %s78, 1
      %p82 = scmp.eq.s32.totalorder %s18, 1
      %p83 = scmp.ne.s32.totalorder %s78, %s80
      %p84 = scmp.eq.s32.totalorder %s18, 0
      %p85 = por %p83, %p84
      %p86 = scmp.ne.s32.totalorder %s78, %s80
      %p87 = scmp.eq.s32.totalorder %s23, 1
      %p88 = por %p86, %p87
      %p89 = scmp.ne.s32.totalorder %s80, %s81
      %p90 = scmp.eq.s32.totalorder %s23, 0
      %p91 = por %p89, %p90
      %p92 = scmp.ne.s32.totalorder %s80, %s81
      %p93 = scmp.eq.s32.totalorder %s24, 1
      %p94 = por %p92, %p93
      %p96 = scmp.ne.s32.totalorder %s81, %s95
      %p97 = scmp.eq.s32.totalorder %s24, 0
      %p98 = por %p96, %p97
      %s100 = sadd.s32 %s99, 1
      %p103 = scmp.eq.s32.totalorder %s18, 1
      %p104 = scmp.ne.s32.totalorder %s99, %s101
      %p105 = scmp.eq.s32.totalorder %s18, 0
      %p106 = por %p104, %p105
      %p107 = scmp.ne.s32.totalorder %s99, %s101
      %p108 = scmp.eq.s32.totalorder %s23, 1
      %p109 = por %p107, %p108
      %p110 = scmp.ne.s32.totalorder %s101, %s102
      %p111 = scmp.eq.s32.totalorder %s23, 0
      %p112 = por %p110, %p111
      %p113 = scmp.ne.s32.totalorder %s101, %s102
      %p114 = scmp.eq.s32.totalorder %s24, 1
      %p115 = por %p113, %p114
      %p117 = scmp.ne.s32.totalorder %s102, %s116
      %p118 = scmp.eq.s32.totalorder %s24, 0
      %p119 = por %p117, %p118
      %s121 = sadd.s32 %s120, 1
      %p124 = scmp.eq.s32.totalorder %s18, 1
      %p125 = scmp.ne.s32.totalorder %s120, %s122
      %p126 = scmp.eq.s32.totalorder %s18, 0
      %p127 = por %p125, %p126
      %p128 = scmp.ne.s32.totalorder %s120, %s122
      %p129 = scmp.eq.s32.totalorder %s23, 1
      %p130 = por %p128, %p129
      %p131 = scmp.ne.s32.totalorder %s122, %s123
      %p132 = scmp.eq.s32.totalorder %s23, 0
      %p133 = por %p131, %p132
      %p134 = scmp.ne.s32.totalorder %s122, %s123
      %p135 = scmp.eq.s32.totalorder %s24, 1
      %p136 = por %p134, %p135
      %p138 = scmp.ne.s32.totalorder %s123, %s137
      %p139 = scmp.eq.s32.totalorder %s24, 0
      %p140 = por %p138, %p139
      %s142 = sadd.s32 %s141, 1
      %p145 = scmp.eq.s32.totalorder %s18, 1
      %p146 = scmp.ne.s32.totalorder %s141, %s143
      %p147 = scmp.eq.s32.totalorder %s18, 0
      %p148 = por %p146, %p147
      %p149 = scmp.ne.s32.totalorder %s141, %s143
      %p150 = scmp.eq.s32.totalorder %s23, 1
      %p151 = por %p149, %p150
      %p152 = scmp.ne.s32.totalorder %s143, %s144
      %p153 = scmp.eq.s32.totalorder %s23, 0
      %p154 = por %p152, %p153
      %p155 = scmp.ne.s32.totalorder %s143, %s144
      %p156 = scmp.eq.s32.totalorder %s24, 1
      %p157 = por %p155, %p156
      %p159 = scmp.ne.s32.totalorder %s144, %s158
      %p160 = scmp.eq.s32.totalorder %s24, 0
      %p161 = por %p159, %p160
      %s163 = sadd.s32 %s162, 1
      %p166 = scmp.eq.s32.totalorder %s18, 1
      %p167 = scmp.ne.s32.totalorder %s162, %s164
      %p168 = scmp.eq.s32.totalorder %s18, 0
      %p169 = por %p167, %p168
      %p170 = scmp.ne.s32.totalorder %s162, %s164
      %p171 = scmp.eq.s32.totalorder %s23, 1
      %p172 = por %p170, %p171
      %p173 = scmp.ne.s32.totalorder %s164, %s165
      %p174 = scmp.eq.s32.totalorder %s23, 0
      %p175 = por %p173, %p174
      %p176 = scmp.ne.s32.totalorder %s164, %s165
      %p177 = scmp.eq.s32.totalorder %s24, 1
      %p178 = por %p176, %p177
      %p180 = scmp.ne.s32.totalorder %s165, %s179
      %p181 = scmp.eq.s32.totalorder %s24, 0
      %p182 = por %p180, %p181
      %s184 = sadd.s32 %s183, 1
      %p187 = scmp.eq.s32.totalorder %s18, 1
      %p188 = scmp.ne.s32.totalorder %s183, %s185
      %p189 = scmp.eq.s32.totalorder %s18, 0
      %p190 = por %p188, %p189
      %p191 = scmp.ne.s32.totalorder %s183, %s185
      %p192 = scmp.eq.s32.totalorder %s23, 1
      %p193 = por %p191, %p192
      %p194 = scmp.ne.s32.totalorder %s185, %s186
      %p195 = scmp.eq.s32.totalorder %s23, 0
      %p196 = por %p194, %p195
      %p197 = scmp.ne.s32.totalorder %s185, %s186
      %p198 = scmp.eq.s32.totalorder %s24, 1
      %p199 = por %p197, %p198
      %p201 = scmp.ne.s32.totalorder %s186, %s200
      %p202 = scmp.eq.s32.totalorder %s24, 0
      %p203 = por %p201, %p202
      %s205 = sadd.s32 %s204, 1
      %p208 = scmp.eq.s32.totalorder %s18, 1
      %p209 = scmp.ne.s32.totalorder %s204, %s206
      %p210 = scmp.eq.s32.totalorder %s18, 0
      %p211 = por %p209, %p210
      %p212 = scmp.ne.s32.totalorder %s204, %s206
      %p213 = scmp.eq.s32.totalorder %s23, 1
      %p214 = por %p212, %p213
      %p215 = scmp.ne.s32.totalorder %s206, %s207
      %p216 = scmp.eq.s32.totalorder %s23, 0
      %p217 = por %p215, %p216
      %p218 = scmp.ne.s32.totalorder %s206, %s207
      %p219 = scmp.eq.s32.totalorder %s24, 1
      %p220 = por %p218, %p219
      %p222 = scmp.ne.s32.totalorder %s207, %s221
      %p223 = scmp.eq.s32.totalorder %s24, 0
      %p224 = por %p222, %p223
      %s225 = ssub.s32 %s18, %s25
      %p226 = scmp.eq.s32.totalorder %s225, 0
      %s228 = sadd.s32 %s227, 1
      %s229 = scalar_select %p226, %s227, %s228
      %p232 = pneg %p226
      %p233 = scmp.eq.s32.totalorder %s18, 1
      %p234 = por %p232, %p233
      %p235 = scmp.ne.s32.totalorder %s227, %s230
      %p236 = scmp.eq.s32.totalorder %s18, 0
      %p237 = por %p235, %p236
      %p238 = scmp.ne.s32.totalorder %s227, %s230
      %p239 = scmp.eq.s32.totalorder %s23, 1
      %p240 = por %p238, %p239
      %p241 = scmp.ne.s32.totalorder %s230, %s231
      %p242 = scmp.eq.s32.totalorder %s23, 0
      %p243 = por %p241, %p242
      %p244 = scmp.ne.s32.totalorder %s230, %s231
      %p245 = scmp.eq.s32.totalorder %s24, 1
      %p246 = por %p244, %p245
      %p248 = scmp.ne.s32.totalorder %s231, %s247
      %p249 = scmp.eq.s32.totalorder %s24, 0
      %p250 = por %p248, %p249
      %p251 = scmp.le.s32.totalorder 1, %s18
      %p252 = scmp.lt.s32.totalorder %s18, 3
      %p253 = pnand %p251, %p252
      %p254 = pneg %p253
      // Predicated region
      $region9: #{tpu_custom_call.1} parent=5 // pred_check
        _
      $region10: #{tpu_custom_call.1} parent=5 // pred_check_branch
        %256 = sbr.rel (%p253) target = $region12
      $region11: #{tpu_custom_call.1} parent=5 // pred_region
        %s257 = ssub.s32 %s18, 1
        // Predicated region
        $region13: #{tpu_custom_call.1} parent=11 // pred_check
          %p258 = pneg %p91
        $region14: #{tpu_custom_call.1} parent=11 // pred_check_branch
          %260 = sbr.rel (%p258) target = $region16
        $region15: #{tpu_custom_call.1} parent=11 // pred_region
          _
        $region16: #{tpu_custom_call.1} parent=11 // pred_fallthru
          _
        // Predicated region
        $region17: #{tpu_custom_call.1} parent=11 // pred_check
          %p261 = pneg %p112
        $region18: #{tpu_custom_call.1} parent=11 // pred_check_branch
          %263 = sbr.rel (%p261) target = $region20
        $region19: #{tpu_custom_call.1} parent=11 // pred_region
          _
        $region20: #{tpu_custom_call.1} parent=11 // pred_fallthru
          _
        // Predicated region
        $region21: #{tpu_custom_call.1} parent=11 // pred_check
          %p264 = pneg %p133
        $region22: #{tpu_custom_call.1} parent=11 // pred_check_branch
          %266 = sbr.rel (%p264) target = $region24
        $region23: #{tpu_custom_call.1} parent=11 // pred_region
          _
        $region24: #{tpu_custom_call.1} parent=11 // pred_fallthru
          _
        // Predicated region
        $region25: #{tpu_custom_call.1} parent=11 // pred_check
          %p267 = pneg %p154
        $region26: #{tpu_custom_call.1} parent=11 // pred_check_branch
          %269 = sbr.rel (%p267) target = $region28
        $region27: #{tpu_custom_call.1} parent=11 // pred_region
          _
        $region28: #{tpu_custom_call.1} parent=11 // pred_fallthru
          _
        // Predicated region
        $region29: #{tpu_custom_call.1} parent=11 // pred_check
          %p270 = pneg %p175
        $region30: #{tpu_custom_call.1} parent=11 // pred_check_branch
          %272 = sbr.rel (%p270) target = $region32
        $region31: #{tpu_custom_call.1} parent=11 // pred_region
          _
        $region32: #{tpu_custom_call.1} parent=11 // pred_fallthru
          _
        // Predicated region
        $region33: #{tpu_custom_call.1} parent=11 // pred_check
          %p273 = pneg %p196
        $region34: #{tpu_custom_call.1} parent=11 // pred_check_branch
          %275 = sbr.rel (%p273) target = $region36
        $region35: #{tpu_custom_call.1} parent=11 // pred_region
          _
        $region36: #{tpu_custom_call.1} parent=11 // pred_fallthru
          _
        // Predicated region
        $region37: #{tpu_custom_call.1} parent=11 // pred_check
          %p276 = pneg %p217
        $region38: #{tpu_custom_call.1} parent=11 // pred_check_branch
          %278 = sbr.rel (%p276) target = $region40
        $region39: #{tpu_custom_call.1} parent=11 // pred_region
          _
        $region40: #{tpu_custom_call.1} parent=11 // pred_fallthru
          _
      $region12: #{tpu_custom_call.1} parent=5 // pred_fallthru
        _
      %p279 = scmp.lt.s32.totalorder %s18, 2
      // Predicated region
      $region41: #{tpu_custom_call.1} parent=5 // pred_check
        %p280 = pneg %p279
      $region42: #{tpu_custom_call.1} parent=5 // pred_check_branch
        %282 = sbr.rel (%p280) target = $region44
      $region43: #{tpu_custom_call.1} parent=5 // pred_region
        // Predicated region
        $region45: #{tpu_custom_call.1} parent=43 // pred_check
          %p283 = pneg %p38
        $region46: #{tpu_custom_call.1} parent=43 // pred_check_branch
          %285 = sbr.rel (%p283) target = $region48
        $region47: #{tpu_custom_call.1} parent=43 // pred_region
          %p286 = scmp.lt.s32.totalorder %s18, 1
          %s287 = scalar_select %p286, %s18, 1
          %s288 = smul.addr %s287, 4
          %s289 = scalar_lea.vmem %s0, %s288
        $region48: #{tpu_custom_call.1} parent=43 // pred_fallthru
          _
        // Predicated region
        $region49: #{tpu_custom_call.1} parent=43 // pred_check
          %p290 = pneg %p64
        $region50: #{tpu_custom_call.1} parent=43 // pred_check_branch
          %292 = sbr.rel (%p290) target = $region52
        $region51: #{tpu_custom_call.1} parent=43 // pred_region
          %p293 = scmp.lt.s32.totalorder %s18, 1
          %s294 = scalar_select %p293, %s18, 1
          %s295 = smul.addr %s294, 4
          %s296 = scalar_lea.vmem %s1, %s295
        $region52: #{tpu_custom_call.1} parent=43 // pred_fallthru
          _
      $region44: #{tpu_custom_call.1} parent=5 // pred_fallthru
        _
      %p297 = scmp.le.s32.totalorder 1, %s18
      %p298 = scmp.lt.s32.totalorder %s18, 3
      %p299 = pnand %p297, %p298
      %p300 = pneg %p299
      // Predicated region
      $region53: #{tpu_custom_call.1} parent=5 // pred_check
        _
      $region54: #{tpu_custom_call.1} parent=5 // pred_check_branch
        %302 = sbr.rel (%p299) target = $region56
      $region55: #{tpu_custom_call.1} parent=5 // pred_region
        %s303 = ssub.s32 %s18, 1
        %p304 = scmp.lt.s32.totalorder %s23, 1
        %s305 = scalar_select %p304, %s23, 1
        %s306 = smul.addr %s305, 4
        %s307 = scalar_lea.vmem %s0, %s306
        %p308 = pneg %p44
        %p309 = pneg %p41
        %p310 = scmp.lt.s32.totalorder %s23, 1
        %s311 = scalar_select %p310, %s23, 1
        %s312 = smul.addr %s311, 4
        %s313 = scalar_lea.vmem %s1, %s312
        %p314 = pneg %p70
        %p315 = pneg %p67
        %p316 = pneg %p91
        %p317 = pneg %p88
        %p318 = pneg %p112
        %p319 = pneg %p109
        %p320 = pneg %p133
        %p321 = pneg %p130
        %p322 = pneg %p154
        %p323 = pneg %p151
        %p324 = pneg %p175
        %p325 = pneg %p172
        %p326 = pneg %p196
        %p327 = pneg %p193
        %p328 = pneg %p217
        %p329 = pneg %p214
        %p330 = pneg %p243
        %p331 = pneg %p240
        %s332 = sand.u32 %s230, 1
        %s333 = scalar_lea.sflag [#allocation3], %s332
        %s334 = sand.u32 %s230, 1
        %s335 = smul.addr %s334, 8
        %s336 = scalar_lea.vmem [#allocation2], %s335
        %p337 = scmp.lt.s32.totalorder %s23, 1
        %s338 = scalar_select %p337, %s23, 1
        %s339 = smul.addr %s338, 4
        %s340 = scalar_lea.vmem %s0, %s339
        %p341 = scmp.lt.s32.totalorder %s23, 1
        %s342 = scalar_select %p341, %s23, 1
        %s343 = smul.addr %s342, 4
        %s344 = scalar_lea.vmem %s1, %s343
        %v346 = vld [vmem:[%s340] sm:$0xf]
        %v347 = vld [vmem:[%s2] sm:$0xf]
        %v348 = vld [vmem:[%s2 + $0x4] sm:$0xf]
        %v349 = vld [vmem:[%s2 + $0x8] sm:$0xf]
        %v350 = vld [vmem:[%s2 + $0xc] sm:$0xf]
        %v351 = vld [vmem:[%s2 + $0x10] sm:$0xf]
        %v352 = vld [vmem:[%s2 + $0x14] sm:$0x7]
        %v353 = vld [vmem:[%s3] sm:$0x1]
        %v355 = vperm.slane %v353, 0
        %v363 = vunpack.c.l.b16 %v347
        %v364 = vunpack.c.l.b16 %v348
        %v365 = vunpack.c.l.b16 %v349
        %v366 = vunpack.c.l.b16 %v350
        %v367 = vunpack.c.l.b16 %v351
        %v368 = vunpack.c.l.b16 %v352
        %v369 = vpack.c.b16 %v364, %v363
        %v370 = vpack.c.b16 %v366, %v365
        %v371 = vpack.c.b16 %v368, %v367
        %vm374 = vcmask 367616
        %v376 = vsel %vm374, %v346, 0
        %vm378 = vcmask 1045504
        %vm379 = vcmask 1046528
        %v380 = vsel %vm378, 4294967295, 65535
        %v381 = vsel %vm379, %v380, 0
        %v383 = vand.u32 %v371, %v381
        %385 = vmatpush.bf16.msra.mxu0 0
        %386 = vmatpush.bf16.msra.mxu0 0
        %387 = vmatpush.bf16.msra.mxu0 0
        %388 = vmatpush.bf16.msra.mxu0 0
        %389 = vmatpush.bf16.msra.mxu0 0
        %390 = vmatpush.bf16.msra.mxu0 %v383
        %391 = vmatpush.bf16.msra.mxu0 %v370
        %392 = vmatpush.bf16.msra.mxu0 %v369
        %393 = vmatmul.bf16.gmra.mxu0 %v376
        %v394 = vpop.f32.mrf.mxu0
        %v395 = vadd.f32 %v355, %v394
        %v396 = vpop.f32.mrf.mxu0
        %397 = vdwg.mxu0
        %399 = vrot.lane.b32.xlu0 %v395, 32
        %v400 = vpop.permute.xlu0 %399
        %402 = vrot.lane.b32.xlu0 %v395, 64
        %v403 = vpop.permute.xlu0 %402
        %vm405 = vcmask 261120
        %v406 = vsel %vm405, %v395, %v400
        %vm407 = vcmask 523264
        %v408 = vsel %vm407, %v406, %v403
        %v409 = vld [vmem:[%s344] sm:$0xf]
        %v410 = vld [vmem:[%s4] sm:$0xf]
        %v411 = vld [vmem:[%s4 + $0x4] sm:$0xf]
        %v412 = vld [vmem:[%s4 + $0x8] sm:$0xf]
        %v413 = vld [vmem:[%s4 + $0xc] sm:$0x7]
        %v418 = vunpack.c.l.b16 %v410
        %v419 = vunpack.c.l.b16 %v411
        %v420 = vunpack.c.l.b16 %v412
        %v421 = vunpack.c.l.b16 %v413
        %v422 = vpack.c.b16 %v419, %v418
        %v423 = vpack.c.b16 %v421, %v420
        %vm425 = vcmask 244736
        %v427 = vsel %vm425, %v409, 0
        %v430 = vsel %vm379, %v423, 0
        %432 = vmatpush.bf16.msra.mxu0 0
        %433 = vmatpush.bf16.msra.mxu0 0
        %434 = vmatpush.bf16.msra.mxu0 0
        %435 = vmatpush.bf16.msra.mxu0 0
        %436 = vmatpush.bf16.msra.mxu0 0
        %437 = vmatpush.bf16.msra.mxu0 0
        %438 = vmatpush.bf16.msra.mxu0 %v430
        %439 = vmatpush.bf16.msra.mxu0 %v422
        %440 = vmatmul.bf16.gmra.mxu0 %v427
        %v441 = vpop.f32.mrf.mxu0
        %v442 = vadd.f32 0.0, %v441
        %v443 = vpop.f32.mrf.mxu0
        %444 = vdwg.mxu0
        %v445 = vadd.f32 %v408, %v442
        %v446 = vmax.f32 %v445, 0.0
        %v447 = vpack.c.bf16 %v446, %v446
        %v448 = vld [vmem:[%s5] sm:$0xf]
        %v449 = vld [vmem:[%s5 + $0x4] sm:$0xf]
        %v450 = vld [vmem:[%s5 + $0x8] sm:$0xf]
        %v451 = vld [vmem:[%s5 + $0xc] sm:$0xf]
        %v452 = vld [vmem:[%s5 + $0x10] sm:$0xf]
        %v453 = vld [vmem:[%s5 + $0x14] sm:$0xf]
        %v454 = vld [vmem:[%s5 + $0x18] sm:$0xf]
        %v455 = vld [vmem:[%s5 + $0x1c] sm:$0xf]
        %v456 = vld [vmem:[%s5 + $0x20] sm:$0xf]
        %v457 = vld [vmem:[%s5 + $0x24] sm:$0xf]
        %v458 = vld [vmem:[%s5 + $0x28] sm:$0xf]
        %v459 = vld [vmem:[%s5 + $0x2c] sm:$0xf]
        %v460 = vld [vmem:[%s6] sm:$0x1]
        %v462 = vperm.slane %v460, 0
        %v476 = vunpack.c.l.b16 %v448
        %v477 = vunpack.c.l.b16 %v449
        %v478 = vunpack.c.l.b16 %v450
        %v479 = vunpack.c.l.b16 %v451
        %v480 = vunpack.c.l.b16 %v452
        %v481 = vunpack.c.l.b16 %v453
        %v482 = vunpack.c.l.b16 %v454
        %v483 = vunpack.c.l.b16 %v455
        %v484 = vunpack.c.l.b16 %v456
        %v485 = vunpack.c.l.b16 %v457
        %v486 = vunpack.c.l.b16 %v458
        %v487 = vunpack.c.l.b16 %v459
        %v488 = vpack.c.b16 %v477, %v476
        %v489 = vpack.c.b16 %v479, %v478
        %v490 = vpack.c.b16 %v481, %v480
        %v491 = vpack.c.b16 %v483, %v482
        %v492 = vpack.c.b16 %v485, %v484
        %v493 = vpack.c.b16 %v487, %v486
        %vm500 = vcmask 785408
        %v502 = vsel %vm500, %v447, 0
        %504 = vmatpush.bf16.msra.mxu0 0
        %505 = vmatpush.bf16.msra.mxu0 0
        %506 = vmatpush.bf16.msra.mxu0 %v493
        %507 = vmatpush.bf16.msra.mxu0 %v492
        %508 = vmatpush.bf16.msra.mxu0 %v491
        %509 = vmatpush.bf16.msra.mxu0 %v490
        %510 = vmatpush.bf16.msra.mxu0 %v489
        %511 = vmatpush.bf16.msra.mxu0 %v488
        %512 = vmatmul.bf16.gmra.mxu0 %v502
        %v513 = vpop.f32.mrf.mxu0
        %v514 = vadd.f32 %v462, %v513
        %v515 = vpop.f32.mrf.mxu0
        %516 = vdwg.mxu0
        %v517 = vmax.f32 %v514, 0.0
        %v518 = vpack.c.bf16 %v517, %v517
        %v519 = vld [vmem:[%s7] sm:$0xf]
        %v520 = vld [vmem:[%s7 + $0x4] sm:$0xf]
        %v521 = vld [vmem:[%s7 + $0x8] sm:$0xf]
        %v522 = vld [vmem:[%s7 + $0xc] sm:$0xf]
        %v523 = vld [vmem:[%s7 + $0x10] sm:$0xf]
        %v524 = vld [vmem:[%s7 + $0x14] sm:$0xf]
        %v525 = vld [vmem:[%s7 + $0x18] sm:$0xf]
        %v526 = vld [vmem:[%s7 + $0x1c] sm:$0xf]
        %v527 = vld [vmem:[%s7 + $0x20] sm:$0xf]
        %v528 = vld [vmem:[%s7 + $0x24] sm:$0xf]
        %v529 = vld [vmem:[%s7 + $0x28] sm:$0xf]
        %v530 = vld [vmem:[%s7 + $0x2c] sm:$0xf]
        %v531 = vld [vmem:[%s8] sm:$0x1]
        %v533 = vperm.slane %v531, 0
        %v547 = vunpack.c.l.b16 %v519
        %v548 = vunpack.c.l.b16 %v520
        %v549 = vunpack.c.l.b16 %v521
        %v550 = vunpack.c.l.b16 %v522
        %v551 = vunpack.c.l.b16 %v523
        %v552 = vunpack.c.l.b16 %v524
        %v553 = vunpack.c.l.b16 %v525
        %v554 = vunpack.c.l.b16 %v526
        %v555 = vunpack.c.l.b16 %v527
        %v556 = vunpack.c.l.b16 %v528
        %v557 = vunpack.c.l.b16 %v529
        %v558 = vunpack.c.l.b16 %v530
        %v559 = vpack.c.b16 %v548, %v547
        %v560 = vpack.c.b16 %v550, %v549
        %v561 = vpack.c.b16 %v552, %v551
        %v562 = vpack.c.b16 %v554, %v553
        %v563 = vpack.c.b16 %v556, %v555
        %v564 = vpack.c.b16 %v558, %v557
        %v572 = vsel %vm500, %v518, 0
        %574 = vmatpush.bf16.msra.mxu0 0
        %575 = vmatpush.bf16.msra.mxu0 0
        %576 = vmatpush.bf16.msra.mxu0 %v564
        %577 = vmatpush.bf16.msra.mxu0 %v563
        %578 = vmatpush.bf16.msra.mxu0 %v562
        %579 = vmatpush.bf16.msra.mxu0 %v561
        %580 = vmatpush.bf16.msra.mxu0 %v560
        %581 = vmatpush.bf16.msra.mxu0 %v559
        %582 = vmatmul.bf16.gmra.mxu0 %v572
        %v583 = vpop.f32.mrf.mxu0
        %v584 = vadd.f32 %v533, %v583
        %v585 = vpop.f32.mrf.mxu0
        %586 = vdwg.mxu0
        %vm587 = vcmask 121856
        %588 = vst.msk [vmem:[%s336] sm:$0xff] %vm587, %v584
        %s589 = sand.u32 %s230, 1
        %s590 = scalar_lea.sflag [#allocation3], %s589
        %s591 = sand.u32 %s230, 1
        %s592 = smul.addr %s591, 8
        %s593 = scalar_lea.vmem [#allocation2], %s592
        // Predicated region
        $region57: #{tpu_custom_call.1} parent=55 // pred_check
          %p594 = pneg %p240
        $region58: #{tpu_custom_call.1} parent=55 // pred_check_branch
          %596 = sbr.rel (%p594) target = $region60
        $region59: #{tpu_custom_call.1} parent=55 // pred_region
          %598 = vsyncadd %s590, 0
          %s599 = smul.addr %s23, 8
          %s600 = scalar_lea.hbm %s9, %s599
          %s602 = sshll.u32 %s593, 4
          %s603 = int_to_ptr.vmem [resolvable:$true] %s602
          %s604 = sshll.u32 %s600, 4
          %s605 = int_to_ptr.hbm [resolvable:$true] %s604
          %607 = dma.vmem_to_hbm [thread:$0]  %s603, 128, %s605, %s590
        $region60: #{tpu_custom_call.1} parent=55 // pred_fallthru
          _
      $region56: #{tpu_custom_call.1} parent=5 // pred_fallthru
        _
      %p608 = scmp.le.s32.totalorder 2, %s18
      // Predicated region
      $region61: #{tpu_custom_call.1} parent=5 // pred_check
        %p609 = pneg %p608
      $region62: #{tpu_custom_call.1} parent=5 // pred_check_branch
        %611 = sbr.rel (%p609) target = $region64
      $region63: #{tpu_custom_call.1} parent=5 // pred_region
        %s612 = ssub.s32 %s18, 2
        // Predicated region
        $region65: #{tpu_custom_call.1} parent=63 // pred_check
          %p613 = pneg %p246
        $region66: #{tpu_custom_call.1} parent=63 // pred_check_branch
          %615 = sbr.rel (%p613) target = $region68
        $region67: #{tpu_custom_call.1} parent=63 // pred_region
          %s616 = sand.u32 %s231, 1
          %s617 = scalar_lea.sflag [#allocation3], %s616
          %s618 = sand.u32 %s231, 1
          %s619 = smul.addr %s618, 8
          %s620 = scalar_lea.vmem [#allocation2], %s619
          %622 = dma.done %s617, 128
        $region68: #{tpu_custom_call.1} parent=63 // pred_fallthru
          _
      $region64: #{tpu_custom_call.1} parent=5 // pred_fallthru
        _
    $region6: #{tpu_custom_call.1} parent=1 // loop_footer
      %s22 = sadd.s32 1, %s18
    $region7: #{tpu_custom_call.1} parent=1 // loop_footer_branch
      %17 = sbr.rel target = $region3
    $region8: #{tpu_custom_call.1} parent=1 // loop_exit
      _
    %623 = vsyncpa [#allocation3], 1
    %s624 = scalar_lea.sflag [#allocation3], 1
    %625 = vsyncpa %s624, 1

</llo_original>
